<compile_context>
chip_gen: v6e
topology: v6e:2x2x1
jax: 0.10.0
libtpu: 0.0.40
codegen_flags: <defaults>
</compile_context>

<pallas_src>
import functools

import jax
import jax.numpy as jnp
from jax.experimental import pallas as pl
from jax.experimental.pallas import tpu as pltpu


_SENTINEL = 1.0e8  # padding coordinate: padded points are never the nearest
                   # neighbour of a real point and are masked out of the sums.


def _round_up(x, m):
    return (x + m - 1) // m * m


def _pick_tiles():
    """Per-generation (TN, TM): smaller dmat tile on v7x (64 MiB VMEM)."""
    try:
        info = pltpu.get_tpu_info()
        vmem = getattr(info, "vmem_capacity_bytes", None)
        if vmem is not None and vmem > 96 * 1024 * 1024:
            return 512, 2048          # v5e / v6e: 128 MiB VMEM
    except Exception:
        pass
    return 256, 1024                  # v7x (64 MiB VMEM) / unknown: conservative


def _chamfer_kernel(xyz1_ref, xyz2t_ref, out1_ref, out2_ref,
                    rmin_ref, cmin_ref, *, n_actual, m_actual, tn, tm):
    ni = pl.program_id(1)
    mj = pl.program_id(2)
    last_ni = pl.num_programs(1) - 1
    last_mj = pl.num_programs(2) - 1

    # Zero this batch's partial-sum outputs on the batch's first tile.
    @pl.when(jnp.logical_and(ni == 0, mj == 0))
    def _():
        out1_ref[...] = jnp.zeros_like(out1_ref)
        out2_ref[...] = jnp.zeros_like(out2_ref)

    x = xyz1_ref[0].astype(jnp.float32)        # (tn, D)
    yt = xyz2t_ref[0].astype(jnp.float32)      # (D, tm), lane-dense in M

    # Pairwise squared distances: ||x||^2 + ||y||^2 - 2 x.y  (MXU cross term).
    xn = jnp.sum(x * x, axis=1, keepdims=True)            # (tn, 1)
    yn = jnp.sum(yt * yt, axis=0, keepdims=True)          # (1, tm)
    cross = jnp.dot(x, yt,
                    preferred_element_type=jnp.float32,
                    precision=jax.lax.Precision.HIGHEST)  # (tn, tm)
    dmat = jnp.maximum(xn + yn - 2.0 * cross, 0.0)

    row_min = jnp.min(dmat, axis=1, keepdims=True)        # (tn, 1)
    col_min = jnp.min(dmat, axis=0, keepdims=True)        # (1, tm)

    # ---- dist1: fold row minima across M tiles (inner axis) --------------
    @pl.when(mj == 0)
    def _():
        rmin_ref[...] = row_min

    @pl.when(mj > 0)
    def _():
        rmin_ref[...] = jnp.minimum(rmin_ref[...], row_min)

    @pl.when(mj == last_mj)
    def _():
        rows = ni * tn + jax.lax.broadcasted_iota(jnp.int32, (tn, 1), 0)
        valid = rows < n_actual
        out1_ref[...] += jnp.sum(
            jnp.where(valid, rmin_ref[...], 0.0)).reshape(out1_ref.shape)

    # ---- dist2: fold column minima across N tiles (outer axis) -----------
    off = pl.multiple_of(mj * tm, tm)

    @pl.when(ni == 0)
    def _():
        cmin_ref[:, pl.ds(off, tm)] = col_min

    @pl.when(ni > 0)
    def _():
        cmin_ref[:, pl.ds(off, tm)] = jnp.minimum(
            cmin_ref[:, pl.ds(off, tm)], col_min)

    @pl.when(ni == last_ni)
    def _():
        cols = mj * tm + jax.lax.broadcasted_iota(jnp.int32, (1, tm), 1)
        valid = cols < m_actual
        out2_ref[...] += jnp.sum(
            jnp.where(valid, cmin_ref[:, pl.ds(off, tm)], 0.0)
        ).reshape(out2_ref.shape)


def chamfer_distance_l2_split(xyz1, xyz2, ignore_zeros=False,
                              tile_n=None, tile_m=None):
    """Returns (mean(dist1), mean(dist2)) — squared-L2 chamfer halves."""
    # TODO(synk): ignore_zeros=True (batch_size==1 path) filters points with a
    # data-dependent boolean mask (dynamic shapes); not expressible in a static
    # Pallas grid, so it is not implemented (PyTorch default is False).
    B, N, D = xyz1.shape
    B2, M, D2 = xyz2.shape
    assert B == B2 and D == D2

    tn_cfg, tm_cfg = _pick_tiles()
    if tile_n is not None:
        tn_cfg = _round_up(int(tile_n), 8)
    if tile_m is not None:
        tm_cfg = _round_up(int(tile_m), 128)

    tn = min(tn_cfg, _round_up(N, 8))
    tm = min(tm_cfg, _round_up(M, 128))
    n_pad = _round_up(N, tn)
    m_pad = _round_up(M, tm)

    if n_pad != N:
        xyz1 = jnp.pad(xyz1, ((0, 0), (0, n_pad - N), (0, 0)),
                       constant_values=_SENTINEL)
    if m_pad != M:
        xyz2 = jnp.pad(xyz2, ((0, 0), (0, m_pad - M), (0, 0)),
                       constant_values=_SENTINEL)

    # Lane-dense layout for the M axis; keep the input dtype (cast in-kernel).
    xyz2t = jnp.transpose(xyz2, (0, 2, 1))        # (B, D, m_pad)

    grid = (B, n_pad // tn, m_pad // tm)
    kernel = functools.partial(_chamfer_kernel, n_actual=N, m_actual=M,
                               tn=tn, tm=tm)

    itemsize = jnp.dtype(xyz1.dtype).itemsize
    cost = pl.CostEstimate(
        flops=2 * B * n_pad * m_pad * D,
        transcendentals=0,
        bytes_accessed=(B * n_pad * D
                        + B * (n_pad // tn) * m_pad * D) * itemsize + 2 * B * 4,
    )

    sum1, sum2 = pl.pallas_call(
        kernel,
        out_shape=(
            jax.ShapeDtypeStruct((B, 1, 1), jnp.float32),
            jax.ShapeDtypeStruct((B, 1, 1), jnp.float32),
        ),
        grid=grid,
        in_specs=[
            pl.BlockSpec((1, tn, D), lambda b, i, j: (b, i, 0)),
            pl.BlockSpec((1, D, tm), lambda b, i, j: (b, 0, j)),
        ],
        out_specs=(
            pl.BlockSpec((1, 1, 1), lambda b, i, j: (b, 0, 0)),
            pl.BlockSpec((1, 1, 1), lambda b, i, j: (b, 0, 0)),
        ),
        scratch_shapes=[
            pltpu.VMEM((tn, 1), jnp.float32),      # running row-min
            pltpu.VMEM((1, m_pad), jnp.float32),   # running col-min (full M)
        ],
        compiler_params=pltpu.CompilerParams(
            dimension_semantics=("parallel", "arbitrary", "arbitrary")),
        cost_estimate=cost,
    )(xyz1, xyz2t)

    mean1 = jnp.sum(sum1) / float(B * N)
    mean2 = jnp.sum(sum2) / float(B * M)
    return mean1, mean2


def _reference(xyz1, xyz2):
    # Pure-JAX reference for validation.
    diff = xyz1[:, :, None, :] - xyz2[:, None, :, :]        # (B, N, M, D)
    d = jnp.sum(diff * diff, axis=-1)                       # (B, N, M)
    dist1 = jnp.min(d, axis=2)                              # (B, N)
    dist2 = jnp.min(d, axis=1)                              # (B, M)
    return jnp.mean(dist1), jnp.mean(dist2)


if __name__ == "__main__":
    key = jax.random.PRNGKey(0)
    k1, k2, k3, k4 = jax.random.split(key, 4)

    # 1) Small single-tile sanity check.
    B, N, M, D = 2, 16, 8, 3
    xyz1 = jax.random.normal(k1, (B, N, D), dtype=jnp.float32)
    xyz2 = jax.random.normal(k2, (B, M, D), dtype=jnp.float32)
    d1, d2 = jax.jit(chamfer_distance_l2_split)(xyz1, xyz2)
    jax.block_until_ready((d1, d2))
    r1, r2 = _reference(xyz1, xyz2)
    assert jnp.allclose(d1, r1, rtol=1e-3, atol=1e-3), (d1, r1)
    assert jnp.allclose(d2, r2, rtol=1e-3, atol=1e-3), (d2, r2)

    # 2) Multi-tile path (small forced tiles -> exercises min folding + masking).
    B, N, M, D = 2, 24, 300, 3
    xyz1 = jax.random.normal(k3, (B, N, D), dtype=jnp.float32)
    xyz2 = jax.random.normal(k4, (B, M, D), dtype=jnp.float32)
    f = jax.jit(functools.partial(chamfer_distance_l2_split,
                                  tile_n=8, tile_m=128))
    d1, d2 = f(xyz1, xyz2)
    jax.block_until_ready((d1, d2))
    r1, r2 = _reference(xyz1, xyz2)
    assert jnp.allclose(d1, r1, rtol=1e-3, atol=1e-3), (d1, r1)
    assert jnp.allclose(d2, r2, rtol=1e-3, atol=1e-3), (d2, r2)

    print("KERNEL_OK")
</pallas_src>

<mosaic_0001>
module attributes {stable_mosaic.version = 11 : i64} {
  func.func @_chamfer_kernel(%arg0: i32, %arg1: i32, %arg2: i32, %arg3: memref<1x16x3xf32, #tpu.memory_space<vmem>>, %arg4: memref<1x3x128xf32, #tpu.memory_space<vmem>>, %arg5: memref<1x1x1xf32, #tpu.memory_space<vmem>>, %arg6: memref<1x1x1xf32, #tpu.memory_space<vmem>>, %arg7: memref<16x1xf32, #tpu.memory_space<vmem>>, %arg8: memref<1x128xf32, #tpu.memory_space<vmem>>) attributes {dimension_semantics = [#tpu.dimension_semantics<parallel>, #tpu.dimension_semantics<arbitrary>, #tpu.dimension_semantics<arbitrary>], iteration_bounds = array<i64: 2, 1, 1>, scalar_prefetch = 0 : i64, scratch_operands = 2 : i64, tpu.core_type = #tpu.core_type<tc>, window_params = [{transform_indices = @transform_0, window_bounds = array<i64: 1, 16, 3>}, {transform_indices = @transform_1, window_bounds = array<i64: 1, 3, 128>}, {transform_indices = @transform_2, window_bounds = array<i64: 1, 1, 1>}, {transform_indices = @transform_3, window_bounds = array<i64: 1, 1, 1>}]} {
    %c0_i32 = arith.constant 0 : i32
    %0 = arith.cmpi eq, %arg1, %c0_i32 : i32
    %c0_i32_0 = arith.constant 0 : i32
    %1 = arith.cmpi eq, %arg2, %c0_i32_0 : i32
    %2 = arith.andi %0, %1 : i1
    %3 = arith.extui %2 : i1 to i32
    %c0_i32_1 = arith.constant 0 : i32
    %4 = arith.cmpi ne, %3, %c0_i32_1 : i32
    scf.if %4 {
      %cst_25 = arith.constant 0.000000e+00 : f32
      %48 = vector.broadcast %cst_25 : f32 to vector<1x1x1xf32>
      %c0_26 = arith.constant 0 : index
      %c0_27 = arith.constant 0 : index
      %c0_28 = arith.constant 0 : index
      %49 = vector.load %arg5[%c0_26, %c0_27, %c0_28] : memref<1x1x1xf32, #tpu.memory_space<vmem>>, vector<1x1x1xf32>
      tpu.vector_store %arg5[%c0_26, %c0_27, %c0_28], %48 {strides = array<i32>} : memref<1x1x1xf32, #tpu.memory_space<vmem>>, vector<1x1x1xf32>,
      %cst_29 = arith.constant 0.000000e+00 : f32
      %50 = vector.broadcast %cst_29 : f32 to vector<1x1x1xf32>
      %c0_30 = arith.constant 0 : index
      %c0_31 = arith.constant 0 : index
      %c0_32 = arith.constant 0 : index
      %51 = vector.load %arg6[%c0_30, %c0_31, %c0_32] : memref<1x1x1xf32, #tpu.memory_space<vmem>>, vector<1x1x1xf32>
      tpu.vector_store %arg6[%c0_30, %c0_31, %c0_32], %50 {strides = array<i32>} : memref<1x1x1xf32, #tpu.memory_space<vmem>>, vector<1x1x1xf32>,
    } else {
    }
    %c0 = arith.constant 0 : index
    %c0_2 = arith.constant 0 : index
    %c0_3 = arith.constant 0 : index
    %5 = vector.load %arg3[%c0, %c0_2, %c0_3] : memref<1x16x3xf32, #tpu.memory_space<vmem>>, vector<1x16x3xf32>
    %6 = vector.shape_cast %5 : vector<1x16x3xf32> to vector<16x3xf32>
    %c0_4 = arith.constant 0 : index
    %c0_5 = arith.constant 0 : index
    %c0_6 = arith.constant 0 : index
    %7 = vector.load %arg4[%c0_4, %c0_5, %c0_6] : memref<1x3x128xf32, #tpu.memory_space<vmem>>, vector<1x3x128xf32>
    %8 = vector.shape_cast %7 : vector<1x3x128xf32> to vector<3x128xf32>
    %9 = arith.mulf %6, %6 : vector<16x3xf32>
    %cst = arith.constant dense<0.000000e+00> : vector<16xf32>
    %10 = vector.multi_reduction <add>, %9, %cst [1] : vector<16x3xf32> to vector<16xf32>
    %11 = vector.shape_cast %10 : vector<16xf32> to vector<16x1xf32>
    %12 = arith.mulf %8, %8 : vector<3x128xf32>
    %cst_7 = arith.constant dense<0.000000e+00> : vector<128xf32>
    %13 = vector.multi_reduction <add>, %12, %cst_7 [0] : vector<3x128xf32> to vector<128xf32>
    %14 = vector.shape_cast %13 : vector<128xf32> to vector<1x128xf32>
    %cst_8 = arith.constant dense<0.000000e+00> : vector<16x128xf32>
    %15 = tpu.matmul %6, %8, %cst_8 {dimension_numbers = #tpu.dot_dimension_numbers<[1], [0], [0], [1], [0, 0, 1, 1], [], []>, precision = #tpu.contract_precision<fp32>} : vector<16x3xf32>, vector<3x128xf32>, vector<16x128xf32> -> vector<16x128xf32>
    %16 = vector.broadcast %11 : vector<16x1xf32> to vector<16x128xf32>
    %17 = vector.broadcast %14 : vector<1x128xf32> to vector<16x128xf32>
    %18 = arith.addf %16, %17 : vector<16x128xf32>
    %cst_9 = arith.constant 2.000000e+00 : f32
    %19 = vector.broadcast %cst_9 : f32 to vector<16x128xf32>
    %20 = arith.mulf %19, %15 : vector<16x128xf32>
    %21 = arith.subf %18, %20 : vector<16x128xf32>
    %cst_10 = arith.constant 0.000000e+00 : f32
    %22 = vector.broadcast %cst_10 : f32 to vector<16x128xf32>
    %23 = arith.maximumf %21, %22 : vector<16x128xf32>
    %cst_11 = arith.constant dense<0x7F800000> : vector<16xf32>
    %24 = vector.multi_reduction <minimumf>, %23, %cst_11 [1] : vector<16x128xf32> to vector<16xf32>
    %25 = vector.shape_cast %24 : vector<16xf32> to vector<16x1xf32>
    %cst_12 = arith.constant dense<0x7F800000> : vector<128xf32>
    %26 = vector.multi_reduction <minimumf>, %23, %cst_12 [0] : vector<16x128xf32> to vector<128xf32>
    %27 = vector.shape_cast %26 : vector<128xf32> to vector<1x128xf32>
    %c0_i32_13 = arith.constant 0 : i32
    %28 = arith.cmpi eq, %arg2, %c0_i32_13 : i32
    %29 = arith.extui %28 : i1 to i32
    %c0_i32_14 = arith.constant 0 : i32
    %30 = arith.cmpi ne, %29, %c0_i32_14 : i32
    scf.if %30 {
      %c0_25 = arith.constant 0 : index
      %c0_26 = arith.constant 0 : index
      %48 = vector.load %arg7[%c0_25, %c0_26] : memref<16x1xf32, #tpu.memory_space<vmem>>, vector<16x1xf32>
      tpu.vector_store %arg7[%c0_25, %c0_26], %25 {strides = array<i32>} : memref<16x1xf32, #tpu.memory_space<vmem>>, vector<16x1xf32>,
    } else {
    }
    %c0_i32_15 = arith.constant 0 : i32
    %31 = arith.cmpi sgt, %arg2, %c0_i32_15 : i32
    %32 = arith.extui %31 : i1 to i32
    %c0_i32_16 = arith.constant 0 : i32
    %33 = arith.cmpi ne, %32, %c0_i32_16 : i32
    scf.if %33 {
      %c0_25 = arith.constant 0 : index
      %c0_26 = arith.constant 0 : index
      %48 = vector.load %arg7[%c0_25, %c0_26] : memref<16x1xf32, #tpu.memory_space<vmem>>, vector<16x1xf32>
      %49 = arith.minimumf %48, %25 : vector<16x1xf32>
      %c0_27 = arith.constant 0 : index
      %c0_28 = arith.constant 0 : index
      %50 = vector.load %arg7[%c0_27, %c0_28] : memref<16x1xf32, #tpu.memory_space<vmem>>, vector<16x1xf32>
      tpu.vector_store %arg7[%c0_27, %c0_28], %49 {strides = array<i32>} : memref<16x1xf32, #tpu.memory_space<vmem>>, vector<16x1xf32>,
    } else {
    }
    %c0_i32_17 = arith.constant 0 : i32
    %34 = arith.cmpi eq, %arg2, %c0_i32_17 : i32
    %35 = arith.extui %34 : i1 to i32
    %c0_i32_18 = arith.constant 0 : i32
    %36 = arith.cmpi ne, %35, %c0_i32_18 : i32
    scf.if %36 {
      %c16_i32 = arith.constant 16 : i32
      %48 = arith.muli %arg1, %c16_i32 : i32
      %49 = tpu.iota {dimensions = array<i32: 0>} : vector<16x1xi32>
      %50 = vector.broadcast %48 : i32 to vector<16x1xi32>
      %51 = arith.addi %50, %49 : vector<16x1xi32>
      %c16_i32_25 = arith.constant 16 : i32
      %52 = vector.broadcast %c16_i32_25 : i32 to vector<16x1xi32>
      %53 = arith.cmpi slt, %51, %52 : vector<16x1xi32>
      %c0_26 = arith.constant 0 : index
      %c0_27 = arith.constant 0 : index
      %c0_28 = arith.constant 0 : index
      %54 = vector.load %arg5[%c0_26, %c0_27, %c0_28] : memref<1x1x1xf32, #tpu.memory_space<vmem>>, vector<1x1x1xf32>
      %c0_29 = arith.constant 0 : index
      %c0_30 = arith.constant 0 : index
      %55 = vector.load %arg7[%c0_29, %c0_30] : memref<16x1xf32, #tpu.memory_space<vmem>>, vector<16x1xf32>
      %cst_31 = arith.constant 0.000000e+00 : f32
      %56 = vector.broadcast %cst_31 : f32 to vector<16x1xf32>
      %57 = arith.select %53, %55, %56 : vector<16x1xi1>, vector<16x1xf32>
      %58 = vector.shape_cast %57 : vector<16x1xf32> to vector<1x16x1xf32>
      %cst_32 = arith.constant dense<0.000000e+00> : vector<1xf32>
      %59 = vector.multi_reduction <add>, %58, %cst_32 [1, 2] : vector<1x16x1xf32> to vector<1xf32>
      %60 = vector.shape_cast %59 : vector<1xf32> to vector<1x1x1xf32>
      %61 = vector.extract %60[0, 0, 0] : f32 from vector<1x1x1xf32>
      %62 = vector.broadcast %61 : f32 to vector<1x1x1xf32>
      %63 = arith.addf %54, %62 : vector<1x1x1xf32>
      %c0_33 = arith.constant 0 : index
      %c0_34 = arith.constant 0 : index
      %c0_35 = arith.constant 0 : index
      %64 = vector.load %arg5[%c0_33, %c0_34, %c0_35] : memref<1x1x1xf32, #tpu.memory_space<vmem>>, vector<1x1x1xf32>
      tpu.vector_store %arg5[%c0_33, %c0_34, %c0_35], %63 {strides = array<i32>} : memref<1x1x1xf32, #tpu.memory_space<vmem>>, vector<1x1x1xf32>,
    } else {
    }
    %c128_i32 = arith.constant 128 : i32
    %37 = arith.muli %arg2, %c128_i32 : i32
    %38 = tpu.assume_multiple %37, 128 : i32
    %c0_i32_19 = arith.constant 0 : i32
    %39 = arith.cmpi eq, %arg1, %c0_i32_19 : i32
    %40 = arith.extui %39 : i1 to i32
    %c0_i32_20 = arith.constant 0 : i32
    %41 = arith.cmpi ne, %40, %c0_i32_20 : i32
    scf.if %41 {
      %c0_25 = arith.constant 0 : index
      %48 = arith.index_cast %38 : i32 to index
      %49 = vector.load %arg8[%c0_25, %48] : memref<1x128xf32, #tpu.memory_space<vmem>>, vector<1x128xf32>
      tpu.vector_store %arg8[%c0_25, %48], %27 {strides = array<i32>} : memref<1x128xf32, #tpu.memory_space<vmem>>, vector<1x128xf32>,
    } else {
    }
    %c0_i32_21 = arith.constant 0 : i32
    %42 = arith.cmpi sgt, %arg1, %c0_i32_21 : i32
    %43 = arith.extui %42 : i1 to i32
    %c0_i32_22 = arith.constant 0 : i32
    %44 = arith.cmpi ne, %43, %c0_i32_22 : i32
    scf.if %44 {
      %c0_25 = arith.constant 0 : index
      %48 = arith.index_cast %38 : i32 to index
      %49 = vector.load %arg8[%c0_25, %48] : memref<1x128xf32, #tpu.memory_space<vmem>>, vector<1x128xf32>
      %50 = arith.minimumf %49, %27 : vector<1x128xf32>
      %c0_26 = arith.constant 0 : index
      %51 = arith.index_cast %38 : i32 to index
      %52 = vector.load %arg8[%c0_26, %51] : memref<1x128xf32, #tpu.memory_space<vmem>>, vector<1x128xf32>
      tpu.vector_store %arg8[%c0_26, %51], %50 {strides = array<i32>} : memref<1x128xf32, #tpu.memory_space<vmem>>, vector<1x128xf32>,
    } else {
    }
    %c0_i32_23 = arith.constant 0 : i32
    %45 = arith.cmpi eq, %arg1, %c0_i32_23 : i32
    %46 = arith.extui %45 : i1 to i32
    %c0_i32_24 = arith.constant 0 : i32
    %47 = arith.cmpi ne, %46, %c0_i32_24 : i32
    scf.if %47 {
      %c128_i32_25 = arith.constant 128 : i32
      %48 = arith.muli %arg2, %c128_i32_25 : i32
      %49 = tpu.iota {dimensions = array<i32: 1>} : vector<1x128xi32>
      %50 = vector.broadcast %48 : i32 to vector<1x128xi32>
      %51 = arith.addi %50, %49 : vector<1x128xi32>
      %c8_i32 = arith.constant 8 : i32
      %52 = vector.broadcast %c8_i32 : i32 to vector<1x128xi32>
      %53 = arith.cmpi slt, %51, %52 : vector<1x128xi32>
      %c0_26 = arith.constant 0 : index
      %c0_27 = arith.constant 0 : index
      %c0_28 = arith.constant 0 : index
      %54 = vector.load %arg6[%c0_26, %c0_27, %c0_28] : memref<1x1x1xf32, #tpu.memory_space<vmem>>, vector<1x1x1xf32>
      %c0_29 = arith.constant 0 : index
      %55 = arith.index_cast %38 : i32 to index
      %56 = vector.load %arg8[%c0_29, %55] : memref<1x128xf32, #tpu.memory_space<vmem>>, vector<1x128xf32>
      %cst_30 = arith.constant 0.000000e+00 : f32
      %57 = vector.broadcast %cst_30 : f32 to vector<1x128xf32>
      %58 = arith.select %53, %56, %57 : vector<1x128xi1>, vector<1x128xf32>
      %59 = vector.shape_cast %58 : vector<1x128xf32> to vector<1x1x128xf32>
      %cst_31 = arith.constant dense<0.000000e+00> : vector<1xf32>
      %60 = vector.multi_reduction <add>, %59, %cst_31 [1, 2] : vector<1x1x128xf32> to vector<1xf32>
      %61 = vector.shape_cast %60 : vector<1xf32> to vector<1x1x1xf32>
      %62 = vector.extract %61[0, 0, 0] : f32 from vector<1x1x1xf32>
      %63 = vector.broadcast %62 : f32 to vector<1x1x1xf32>
      %64 = arith.addf %54, %63 : vector<1x1x1xf32>
      %c0_32 = arith.constant 0 : index
      %c0_33 = arith.constant 0 : index
      %c0_34 = arith.constant 0 : index
      %65 = vector.load %arg6[%c0_32, %c0_33, %c0_34] : memref<1x1x1xf32, #tpu.memory_space<vmem>>, vector<1x1x1xf32>
      tpu.vector_store %arg6[%c0_32, %c0_33, %c0_34], %64 {strides = array<i32>} : memref<1x1x1xf32, #tpu.memory_space<vmem>>, vector<1x1x1xf32>,
    } else {
    }
    return
  }
  func.func @transform_0(%arg0: i32, %arg1: i32, %arg2: i32) -> (i32, i32, i32) {
    %c0_i32 = arith.constant 0 : i32
    %c0_i32_0 = arith.constant 0 : i32
    return %arg0, %arg1, %c0_i32 : i32, i32, i32
  }
  func.func @transform_1(%arg0: i32, %arg1: i32, %arg2: i32) -> (i32, i32, i32) {
    %c0_i32 = arith.constant 0 : i32
    %c0_i32_0 = arith.constant 0 : i32
    return %arg0, %c0_i32, %arg2 : i32, i32, i32
  }
  func.func @transform_2(%arg0: i32, %arg1: i32, %arg2: i32) -> (i32, i32, i32) {
    %c0_i32 = arith.constant 0 : i32
    %c0_i32_0 = arith.constant 0 : i32
    %c0_i32_1 = arith.constant 0 : i32
    return %arg0, %c0_i32, %c0_i32_0 : i32, i32, i32
  }
  func.func @transform_3(%arg0: i32, %arg1: i32, %arg2: i32) -> (i32, i32, i32) {
    %c0_i32 = arith.constant 0 : i32
    %c0_i32_0 = arith.constant 0 : i32
    %c0_i32_1 = arith.constant 0 : i32
    return %arg0, %c0_i32, %c0_i32_0 : i32, i32, i32
  }
}

</mosaic_0001>

<llo_original>
// kernel: chamfer_distance_l2_split.1
$region0: #{chamfer_distance_l2_split.1}
  #allocation0 [shape = 'u32[]', space=smem, size = 0x4, offset = 0x4, fixed_abs, tag = 'smem constant byte address 0x4 - core index']
  #allocation1 [shape = 'u32[144,128]{1,0:T(1,128)}', space=vmem, size = 0x12000, scoped, tag = 'internal scratch']
  #allocation2 [shape = 'f32[16,1]{1,0:T(8,128)}', space=vmem, size = 0x2000, scoped, tag = 'scratch operand']
  #allocation3 [shape = 'f32[1,128]{1,0:T(1,128)}', space=vmem, size = 0x200, scoped, tag = 'scratch operand']
  %s0 = inlined_call_operand.vmem [shape: f32[2,16,3], index: 0, kind: input, shape index: {}]
  %s1 = inlined_call_operand.vmem [shape: f32[2,3,128], index: 1, kind: input, shape index: {}]
  %s2 = inlined_call_operand.vmem [shape: f32[2,1,1], index: 2, kind: output, shape index: {0}]
  %s3 = inlined_call_operand.vmem [shape: f32[2,1,1], index: 3, kind: output, shape index: {1}]
  %4 = xla_tuple %s2, %s3
  %s5 = sld [smem:[#allocation0]]
  $region77: #{chamfer_distance_l2_split.1} parent=0
    _
  %s7 = ssub.s32 1, %s5
  %s8 = scalar_select 0, %s7, %s5
  loop: start=0, step=1, limit=4
  $region2: #{chamfer_distance_l2_split.1} parent=0 // loop_pre_header
    _
  $region3: #{chamfer_distance_l2_split.1} parent=0 // loop_header
    %s10 = sphi 0, %s14
    %p11 = scmp.ge.s32.totalorder %s10, 4
    %s17 = sphi 0, %s36
    %s18 = sphi 0, %s32
    %s19 = sphi 0, %s28
    %s20 = sphi 0, %s17
    %s21 = sphi 0, %s18
    %s22 = sphi 0, %s19
    %s23 = sphi 0, %s20
    %s24 = sphi 0, %s21
    %s25 = sphi 0, %s22
    %s41 = sphi 0, %s43
    %s44 = sphi 0, %s41
    %s45 = sphi 0, %s44
    %s61 = sphi 0, %s45
    %s69 = sphi 0, %s71
    %s72 = sphi 0, %s69
    %s73 = sphi 0, %s72
    %s89 = sphi 0, %s73
    %s95 = sphi 0, %s97
    %s98 = sphi 0, %s95
    %s99 = sphi 0, %s98
    %s115 = sphi 0, %s99
    %s121 = sphi 0, %s123
    %s124 = sphi 0, %s121
    %s125 = sphi 0, %s124
    %s141 = sphi 0, %s125
  $region4: #{chamfer_distance_l2_split.1} parent=0 // loop_header_branch
    %13 = sbr.rel (%p11) target = $region8
  $region5: #{chamfer_distance_l2_split.1} parent=0 // loop_body
    %s15 = ssub.s32 %s10, 1
    %s16 = ssub.s32 %s10, 2
    %s26 = sadd.s32 1, %s19
    %p27 = scmp.ge.s32.totalorder %s26, 1
    %s28 = scalar_select %p27, 0, %s26
    %s29 = sadd.s32 1, %s18
    %s30 = scalar_select %p27, %s29, %s18
    %p31 = scmp.ge.s32.totalorder %s30, 1
    %s32 = scalar_select %p31, 0, %s30
    %s33 = sadd.s32 1, %s17
    %s34 = scalar_select %p31, %s33, %s17
    %p35 = scmp.ge.s32.totalorder %s34, 2
    %s36 = scalar_select %p35, 0, %s34
    %s37 = ssub.s32 %s17, %s36
    %s38 = ssub.s32 %s18, %s32
    %s39 = sor.u32 %s37, %s38
    %p40 = scmp.eq.s32.totalorder %s39, 0
    %s42 = sadd.s32 %s41, 1
    %s43 = scalar_select %p40, %s41, %s42
    %p46 = pneg %p40
    %p47 = scmp.eq.s32.totalorder %s10, 1
    %p48 = por %p46, %p47
    %p49 = scmp.ne.s32.totalorder %s41, %s44
    %p50 = scmp.eq.s32.totalorder %s10, 0
    %p51 = por %p49, %p50
    %p52 = scmp.ne.s32.totalorder %s41, %s44
    %p53 = scmp.eq.s32.totalorder %s15, 1
    %p54 = por %p52, %p53
    %p55 = scmp.ne.s32.totalorder %s44, %s45
    %p56 = scmp.eq.s32.totalorder %s15, 0
    %p57 = por %p55, %p56
    %p58 = scmp.ne.s32.totalorder %s44, %s45
    %p59 = scmp.eq.s32.totalorder %s16, 1
    %p60 = por %p58, %p59
    %p62 = scmp.ne.s32.totalorder %s45, %s61
    %p63 = scmp.eq.s32.totalorder %s16, 0
    %p64 = por %p62, %p63
    %s65 = ssub.s32 %s17, %s36
    %s66 = ssub.s32 %s19, %s28
    %s67 = sor.u32 %s65, %s66
    %p68 = scmp.eq.s32.totalorder %s67, 0
    %s70 = sadd.s32 %s69, 1
    %s71 = scalar_select %p68, %s69, %s70
    %p74 = pneg %p68
    %p75 = scmp.eq.s32.totalorder %s10, 1
    %p76 = por %p74, %p75
    %p77 = scmp.ne.s32.totalorder %s69, %s72
    %p78 = scmp.eq.s32.totalorder %s10, 0
    %p79 = por %p77, %p78
    %p80 = scmp.ne.s32.totalorder %s69, %s72
    %p81 = scmp.eq.s32.totalorder %s15, 1
    %p82 = por %p80, %p81
    %p83 = scmp.ne.s32.totalorder %s72, %s73
    %p84 = scmp.eq.s32.totalorder %s15, 0
    %p85 = por %p83, %p84
    %p86 = scmp.ne.s32.totalorder %s72, %s73
    %p87 = scmp.eq.s32.totalorder %s16, 1
    %p88 = por %p86, %p87
    %p90 = scmp.ne.s32.totalorder %s73, %s89
    %p91 = scmp.eq.s32.totalorder %s16, 0
    %p92 = por %p90, %p91
    %s93 = ssub.s32 %s17, %s36
    %p94 = scmp.eq.s32.totalorder %s93, 0
    %s96 = sadd.s32 %s95, 1
    %s97 = scalar_select %p94, %s95, %s96
    %p100 = pneg %p94
    %p101 = scmp.eq.s32.totalorder %s10, 1
    %p102 = por %p100, %p101
    %p103 = scmp.ne.s32.totalorder %s95, %s98
    %p104 = scmp.eq.s32.totalorder %s10, 0
    %p105 = por %p103, %p104
    %p106 = scmp.ne.s32.totalorder %s95, %s98
    %p107 = scmp.eq.s32.totalorder %s15, 1
    %p108 = por %p106, %p107
    %p109 = scmp.ne.s32.totalorder %s98, %s99
    %p110 = scmp.eq.s32.totalorder %s15, 0
    %p111 = por %p109, %p110
    %p112 = scmp.ne.s32.totalorder %s98, %s99
    %p113 = scmp.eq.s32.totalorder %s16, 1
    %p114 = por %p112, %p113
    %p116 = scmp.ne.s32.totalorder %s99, %s115
    %p117 = scmp.eq.s32.totalorder %s16, 0
    %p118 = por %p116, %p117
    %s119 = ssub.s32 %s17, %s36
    %p120 = scmp.eq.s32.totalorder %s119, 0
    %s122 = sadd.s32 %s121, 1
    %s123 = scalar_select %p120, %s121, %s122
    %p126 = pneg %p120
    %p127 = scmp.eq.s32.totalorder %s10, 1
    %p128 = por %p126, %p127
    %p129 = scmp.ne.s32.totalorder %s121, %s124
    %p130 = scmp.eq.s32.totalorder %s10, 0
    %p131 = por %p129, %p130
    %p132 = scmp.ne.s32.totalorder %s121, %s124
    %p133 = scmp.eq.s32.totalorder %s15, 1
    %p134 = por %p132, %p133
    %p135 = scmp.ne.s32.totalorder %s124, %s125
    %p136 = scmp.eq.s32.totalorder %s15, 0
    %p137 = por %p135, %p136
    %p138 = scmp.ne.s32.totalorder %s124, %s125
    %p139 = scmp.eq.s32.totalorder %s16, 1
    %p140 = por %p138, %p139
    %p142 = scmp.ne.s32.totalorder %s125, %s141
    %p143 = scmp.eq.s32.totalorder %s16, 0
    %p144 = por %p142, %p143
    %p145 = scmp.le.s32.totalorder 1, %s10
    %p146 = scmp.lt.s32.totalorder %s10, 3
    %p147 = pnand %p145, %p146
    %p148 = pneg %p147
    // Predicated region
    $region9: #{chamfer_distance_l2_split.1} parent=5 // pred_check
      _
    $region10: #{chamfer_distance_l2_split.1} parent=5 // pred_check_branch
      %150 = sbr.rel (%p147) target = $region12
    $region11: #{chamfer_distance_l2_split.1} parent=5 // pred_region
      %s151 = ssub.s32 %s10, 1
    $region12: #{chamfer_distance_l2_split.1} parent=5 // pred_fallthru
      _
    %p152 = scmp.lt.s32.totalorder %s10, 2
    // Predicated region
    $region13: #{chamfer_distance_l2_split.1} parent=5 // pred_check
      %p153 = pneg %p152
    $region14: #{chamfer_distance_l2_split.1} parent=5 // pred_check_branch
      %155 = sbr.rel (%p153) target = $region16
    $region15: #{chamfer_distance_l2_split.1} parent=5 // pred_region
      // Predicated region
      $region17: #{chamfer_distance_l2_split.1} parent=15 // pred_check
        %p156 = pneg %p51
      $region18: #{chamfer_distance_l2_split.1} parent=15 // pred_check_branch
        %158 = sbr.rel (%p156) target = $region20
      $region19: #{chamfer_distance_l2_split.1} parent=15 // pred_region
        %s159 = smul.u32 2, %s18
        %p160 = scmp.lt.s32.totalorder %s17, 1
        %s161 = scalar_select %p160, %s17, 1
        %p162 = scmp.lt.s32.totalorder %s159, 1
        %s163 = scalar_select %p162, %s159, 1
        %s164 = smul.addr %s161, 2
        %s165 = sadd.s32 %s163, %s164
        %s166 = smul.addr %s165, 8
        %s167 = scalar_lea.vmem %s0, %s166
        %s168 = smul.u32 2, %s18
      $region20: #{chamfer_distance_l2_split.1} parent=15 // pred_fallthru
        _
      // Predicated region
      $region21: #{chamfer_distance_l2_split.1} parent=15 // pred_check
        %p169 = pneg %p79
      $region22: #{chamfer_distance_l2_split.1} parent=15 // pred_check_branch
        %171 = sbr.rel (%p169) target = $region24
      $region23: #{chamfer_distance_l2_split.1} parent=15 // pred_region
        %p172 = scmp.lt.s32.totalorder %s17, 1
        %s173 = scalar_select %p172, %s17, 1
        %p174 = scmp.lt.s32.totalorder %s19, 0
        %s175 = scalar_select %p174, %s19, 0
        %s176 = sadd.s32 %s175, %s173
        %s177 = smul.addr %s176, 4
        %s178 = scalar_lea.vmem %s1, %s177
      $region24: #{chamfer_distance_l2_split.1} parent=15 // pred_fallthru
        _
    $region16: #{chamfer_distance_l2_split.1} parent=5 // pred_fallthru
      _
    %p179 = scmp.le.s32.totalorder 1, %s10
    %p180 = scmp.lt.s32.totalorder %s10, 3
    %p181 = pnand %p179, %p180
    %p182 = pneg %p181
    // Predicated region
    $region25: #{chamfer_distance_l2_split.1} parent=5 // pred_check
      _
    $region26: #{chamfer_distance_l2_split.1} parent=5 // pred_check_branch
      %184 = sbr.rel (%p181) target = $region28
    $region27: #{chamfer_distance_l2_split.1} parent=5 // pred_region
      %s185 = ssub.s32 %s10, 1
      %s186 = smul.u32 2, %s21
      %p187 = scmp.lt.s32.totalorder %s20, 1
      %s188 = scalar_select %p187, %s20, 1
      %p189 = scmp.lt.s32.totalorder %s186, 1
      %s190 = scalar_select %p189, %s186, 1
      %s191 = smul.addr %s188, 2
      %s192 = sadd.s32 %s190, %s191
      %s193 = smul.addr %s192, 8
      %s194 = scalar_lea.vmem %s0, %s193
      %p195 = pneg %p57
      %p196 = pneg %p54
      %p197 = scmp.lt.s32.totalorder %s20, 1
      %s198 = scalar_select %p197, %s20, 1
      %p199 = scmp.lt.s32.totalorder %s22, 0
      %s200 = scalar_select %p199, %s22, 0
      %s201 = sadd.s32 %s200, %s198
      %s202 = smul.addr %s201, 4
      %s203 = scalar_lea.vmem %s1, %s202
      %p204 = pneg %p85
      %p205 = pneg %p82
      %p206 = pneg %p111
      %p207 = pneg %p108
      %p208 = scmp.lt.s32.totalorder %s20, 1
      %s209 = scalar_select %p208, %s20, 1
      %s210 = scalar_lea.vmem %s2, %s209
      %p211 = pneg %p137
      %p212 = pneg %p134
      %p213 = scmp.lt.s32.totalorder %s20, 1
      %s214 = scalar_select %p213, %s20, 1
      %s215 = scalar_lea.vmem %s3, %s214
      %s216 = smul.u32 2, %s21
      %p217 = scmp.lt.s32.totalorder %s20, 1
      %s218 = scalar_select %p217, %s20, 1
      %p219 = scmp.lt.s32.totalorder %s216, 1
      %s220 = scalar_select %p219, %s216, 1
      %s221 = smul.addr %s218, 2
      %s222 = sadd.s32 %s220, %s221
      %s223 = smul.addr %s222, 8
      %s224 = scalar_lea.vmem %s0, %s223
      %s225 = smul.u32 2, %s21
      %p226 = scmp.lt.s32.totalorder %s20, 1
      %s227 = scalar_select %p226, %s20, 1
      %p228 = scmp.lt.s32.totalorder %s22, 0
      %s229 = scalar_select %p228, %s22, 0
      %s230 = sadd.s32 %s229, %s227
      %s231 = smul.addr %s230, 4
      %s232 = scalar_lea.vmem %s1, %s231
      %p233 = scmp.lt.s32.totalorder %s20, 1
      %s234 = scalar_select %p233, %s20, 1
      %s235 = scalar_lea.vmem %s2, %s234
      %p236 = scmp.lt.s32.totalorder %s20, 1
      %s237 = scalar_select %p236, %s20, 1
      %s238 = scalar_lea.vmem %s3, %s237
      %p239 = scmp.eq.s32.totalorder %s21, 0
      %p240 = scmp.eq.s32.totalorder %s22, 0
      %p241 = pnand %p239, %p240
      %p242 = pneg %p241
      // Predicated region
      $region29: #{chamfer_distance_l2_split.1} parent=27 // pred_check
        _
      $region30: #{chamfer_distance_l2_split.1} parent=27 // pred_check_branch
        %244 = sbr.rel (%p241) target = $region32
      $region31: #{chamfer_distance_l2_split.1} parent=27 // pred_region
        %vm245 = vcmask 0
        %246 = vst.msk [vmem:[%s235] sm:$0x1] %vm245, 0.0
        %247 = vst.msk [vmem:[%s238] sm:$0x1] %vm245, 0.0
      $region32: #{chamfer_distance_l2_split.1} parent=27 // pred_fallthru
        _
      %v248 = vld [vmem:[%s224] sm:$0xff]
      %v249 = vld [vmem:[%s224 + $0x8] sm:$0xff]
      %v250 = vld [vmem:[%s232] sm:$0x7]
      %v251 = vmul.f32 %v248, %v248
      %v252 = vmul.f32 %v249, %v249
      %vm253 = vcmask 23552
      %v254 = vsel %vm253, %v251, 0.0
      %255 = vadd.xlane.f32.xlu0 %v254
      %v256 = vpop.xlane.xlu0 %255
      %v257 = vsel %vm253, %v252, 0.0
      %258 = vadd.xlane.f32.xlu0 %v257
      %v259 = vpop.xlane.xlu0 %258
      %v260 = vmul.f32 %v250, %v250
      %vm261 = vcmask 1042432
      %v262 = vsel %vm261, %v260, 0.0
      %v263 = vrot.slane %v262, 4
      %v264 = vadd.f32 %v262, %v263
      %v265 = vrot.slane %v264, 2
      %v266 = vadd.f32 %v264, %v265
      %v267 = vrot.slane %v266, 1
      %v268 = vadd.f32 %v266, %v267
      %v270 = vsel %vm253, %v248, 0
      %v273 = vsel %vm253, %v249, 0
      %v276 = vsel %vm261, %v250, 0
      %278 = vmatprep.subr.mxu0 0.0
      %279 = vmatpush1.msra.mxu0 0.0
      %280 = vmatprep.subr.mxu0 0.0
      %281 = vmatpush1.msra.mxu0 0.0
      %282 = vmatprep.subr.mxu0 0.0
      %283 = vmatpush1.msra.mxu0 0.0
      %284 = vmatprep.subr.mxu0 0.0
      %285 = vmatpush1.msra.mxu0 0.0
      %286 = vmatprep.subr.mxu0 0.0
      %287 = vmatpush1.msra.mxu0 0.0
      %288 = vmatprep.subr.mxu0 0.0
      %289 = vmatpush1.msra.mxu0 0.0
      %290 = vmatprep.subr.mxu0 0.0
      %291 = vmatpush1.msra.mxu0 0.0
      %292 = vmatprep.subr.mxu0 0.0
      %293 = vmatpush1.msra.mxu0 0.0
      %294 = vmatprep.subr.mxu0 0.0
      %295 = vmatpush1.msra.mxu0 0.0
      %296 = vmatprep.subr.mxu0 0.0
      %297 = vmatpush1.msra.mxu0 0.0
      %298 = vmatprep.subr.mxu0 0.0
      %299 = vmatpush1.msra.mxu0 0.0
      %300 = vmatprep.subr.mxu0 0.0
      %301 = vmatpush1.msra.mxu0 0.0
      %302 = vmatprep.subr.mxu0 0.0
      %303 = vmatpush1.msra.mxu0 0.0
      %304 = vmatprep.subr.mxu0 0.0
      %305 = vmatpush1.msra.mxu0 0.0
      %306 = vmatprep.subr.mxu0 0.0
      %307 = vmatpush1.msra.mxu0 0.0
      %308 = vmatprep.subr.mxu0 0.0
      %v309 = vand.u32 %v276, 4294901760
      %310 = vmatpush1.msra.mxu0 %v309
      %311 = vmatprep.subr.mxu0 0.0
      %312 = vmatpush2.msra.mxu0 0.0
      %313 = vmatprep.subr.mxu0 0.0
      %314 = vmatpush2.msra.mxu0 0.0
      %315 = vmatprep.subr.mxu0 0.0
      %316 = vmatpush2.msra.mxu0 0.0
      %317 = vmatprep.subr.mxu0 0.0
      %318 = vmatpush2.msra.mxu0 0.0
      %319 = vmatprep.subr.mxu0 0.0
      %320 = vmatpush2.msra.mxu0 0.0
      %321 = vmatprep.subr.mxu0 0.0
      %322 = vmatpush2.msra.mxu0 0.0
      %323 = vmatprep.subr.mxu0 0.0
      %324 = vmatpush2.msra.mxu0 0.0
      %325 = vmatprep.subr.mxu0 0.0
      %326 = vmatpush2.msra.mxu0 0.0
      %327 = vmatprep.subr.mxu0 0.0
      %328 = vmatpush2.msra.mxu0 0.0
      %329 = vmatprep.subr.mxu0 0.0
      %330 = vmatpush2.msra.mxu0 0.0
      %331 = vmatprep.subr.mxu0 0.0
      %332 = vmatpush2.msra.mxu0 0.0
      %333 = vmatprep.subr.mxu0 0.0
      %334 = vmatpush2.msra.mxu0 0.0
      %335 = vmatprep.subr.mxu0 0.0
      %336 = vmatpush2.msra.mxu0 0.0
      %337 = vmatprep.subr.mxu0 0.0
      %338 = vmatpush2.msra.mxu0 0.0
      %339 = vmatprep.subr.mxu0 0.0
      %340 = vmatpush2.msra.mxu0 0.0
      %341 = vmatprep.subr.mxu0 0.0
      %342 = vmatpush2.msra.mxu0 0.0
      %343 = vmatprep.mubr.f32.mxu0 0.0
      %v344 = vand.u32 %v270, 4294901760
      %v345 = vsub.f32 %v270, %v344
      %v346 = vand.u32 %v345, 4294901760
      %v347 = vsub.f32 %v345, %v346
      %v348 = vand.u32 %v347, 4294901760
      %349 = vmatmul.mubr.f32.gmra.mxu0 %v348
      %v350 = vpop.f32.mrf.mxu0
      %v351 = vadd.f32 0.0, %v350
      %v352 = vpop.f32.mrf.mxu0
      %353 = vmatprep.mubr.f32.mxu0 0.0
      %v354 = vand.u32 %v273, 4294901760
      %v355 = vsub.f32 %v273, %v354
      %v356 = vand.u32 %v355, 4294901760
      %v357 = vsub.f32 %v355, %v356
      %v358 = vand.u32 %v357, 4294901760
      %359 = vmatmul.mubr.f32.gmra.mxu0 %v358
      %v360 = vpop.f32.mrf.mxu0
      %v361 = vadd.f32 0.0, %v360
      %v362 = vpop.f32.mrf.mxu0
      %363 = vdwg.mxu0
      %364 = vmatprep.subr.mxu0 0.0
      %365 = vmatpush1.msra.mxu0 0.0
      %366 = vmatprep.subr.mxu0 0.0
      %367 = vmatpush1.msra.mxu0 0.0
      %368 = vmatprep.subr.mxu0 0.0
      %369 = vmatpush1.msra.mxu0 0.0
      %370 = vmatprep.subr.mxu0 0.0
      %371 = vmatpush1.msra.mxu0 0.0
      %372 = vmatprep.subr.mxu0 0.0
      %373 = vmatpush1.msra.mxu0 0.0
      %374 = vmatprep.subr.mxu0 0.0
      %375 = vmatpush1.msra.mxu0 0.0
      %376 = vmatprep.subr.mxu0 0.0
      %377 = vmatpush1.msra.mxu0 0.0
      %378 = vmatprep.subr.mxu0 0.0
      %379 = vmatpush1.msra.mxu0 0.0
      %380 = vmatprep.subr.mxu0 0.0
      %381 = vmatpush1.msra.mxu0 0.0
      %382 = vmatprep.subr.mxu0 0.0
      %383 = vmatpush1.msra.mxu0 0.0
      %384 = vmatprep.subr.mxu0 0.0
      %385 = vmatpush1.msra.mxu0 0.0
      %386 = vmatprep.subr.mxu0 0.0
      %387 = vmatpush1.msra.mxu0 0.0
      %388 = vmatprep.subr.mxu0 0.0
      %389 = vmatpush1.msra.mxu0 0.0
      %390 = vmatprep.subr.mxu0 0.0
      %391 = vmatpush1.msra.mxu0 0.0
      %392 = vmatprep.subr.mxu0 0.0
      %393 = vmatpush1.msra.mxu0 0.0
      %394 = vmatprep.subr.mxu0 0.0
      %v395 = vand.u32 %v276, 4294901760
      %v396 = vsub.f32 %v276, %v395
      %v397 = vand.u32 %v396, 4294901760
      %v398 = vsub.f32 %v396, %v397
      %v399 = vand.u32 %v398, 4294901760
      %400 = vmatpush1.msra.mxu0 %v399
      %401 = vmatprep.subr.mxu0 0.0
      %402 = vmatpush2.msra.mxu0 0.0
      %403 = vmatprep.subr.mxu0 0.0
      %404 = vmatpush2.msra.mxu0 0.0
      %405 = vmatprep.subr.mxu0 0.0
      %406 = vmatpush2.msra.mxu0 0.0
      %407 = vmatprep.subr.mxu0 0.0
      %408 = vmatpush2.msra.mxu0 0.0
      %409 = vmatprep.subr.mxu0 0.0
      %410 = vmatpush2.msra.mxu0 0.0
      %411 = vmatprep.subr.mxu0 0.0
      %412 = vmatpush2.msra.mxu0 0.0
      %413 = vmatprep.subr.mxu0 0.0
      %414 = vmatpush2.msra.mxu0 0.0
      %415 = vmatprep.subr.mxu0 0.0
      %416 = vmatpush2.msra.mxu0 0.0
      %417 = vmatprep.subr.mxu0 0.0
      %418 = vmatpush2.msra.mxu0 0.0
      %419 = vmatprep.subr.mxu0 0.0
      %420 = vmatpush2.msra.mxu0 0.0
      %421 = vmatprep.subr.mxu0 0.0
      %422 = vmatpush2.msra.mxu0 0.0
      %423 = vmatprep.subr.mxu0 0.0
      %424 = vmatpush2.msra.mxu0 0.0
      %425 = vmatprep.subr.mxu0 0.0
      %426 = vmatpush2.msra.mxu0 0.0
      %427 = vmatprep.subr.mxu0 0.0
      %428 = vmatpush2.msra.mxu0 0.0
      %429 = vmatprep.subr.mxu0 0.0
      %430 = vmatpush2.msra.mxu0 0.0
      %431 = vmatprep.subr.mxu0 0.0
      %432 = vmatpush2.msra.mxu0 0.0
      %433 = vmatprep.mubr.f32.mxu0 0.0
      %v434 = vand.u32 %v270, 4294901760
      %435 = vmatmul.mubr.f32.gmra.mxu0 %v434
      %v436 = vpop.f32.mrf.mxu0
      %v437 = vadd.f32 %v351, %v436
      %v438 = vpop.f32.mrf.mxu0
      %439 = vmatprep.mubr.f32.mxu0 0.0
      %v440 = vand.u32 %v273, 4294901760
      %441 = vmatmul.mubr.f32.gmra.mxu0 %v440
      %v442 = vpop.f32.mrf.mxu0
      %v443 = vadd.f32 %v361, %v442
      %v444 = vpop.f32.mrf.mxu0
      %445 = vdwg.mxu0
      %446 = vmatprep.subr.mxu0 0.0
      %447 = vmatpush1.msra.mxu0 0.0
      %448 = vmatprep.subr.mxu0 0.0
      %449 = vmatpush1.msra.mxu0 0.0
      %450 = vmatprep.subr.mxu0 0.0
      %451 = vmatpush1.msra.mxu0 0.0
      %452 = vmatprep.subr.mxu0 0.0
      %453 = vmatpush1.msra.mxu0 0.0
      %454 = vmatprep.subr.mxu0 0.0
      %455 = vmatpush1.msra.mxu0 0.0
      %456 = vmatprep.subr.mxu0 0.0
      %457 = vmatpush1.msra.mxu0 0.0
      %458 = vmatprep.subr.mxu0 0.0
      %459 = vmatpush1.msra.mxu0 0.0
      %460 = vmatprep.subr.mxu0 0.0
      %461 = vmatpush1.msra.mxu0 0.0
      %462 = vmatprep.subr.mxu0 0.0
      %463 = vmatpush1.msra.mxu0 0.0
      %464 = vmatprep.subr.mxu0 0.0
      %465 = vmatpush1.msra.mxu0 0.0
      %466 = vmatprep.subr.mxu0 0.0
      %467 = vmatpush1.msra.mxu0 0.0
      %468 = vmatprep.subr.mxu0 0.0
      %469 = vmatpush1.msra.mxu0 0.0
      %470 = vmatprep.subr.mxu0 0.0
      %471 = vmatpush1.msra.mxu0 0.0
      %472 = vmatprep.subr.mxu0 0.0
      %473 = vmatpush1.msra.mxu0 0.0
      %474 = vmatprep.subr.mxu0 0.0
      %475 = vmatpush1.msra.mxu0 0.0
      %476 = vmatprep.subr.mxu0 0.0
      %v477 = vand.u32 %v276, 4294901760
      %v478 = vsub.f32 %v276, %v477
      %479 = vmatpush1.msra.mxu0 %v478
      %480 = vmatprep.subr.mxu0 0.0
      %481 = vmatpush2.msra.mxu0 0.0
      %482 = vmatprep.subr.mxu0 0.0
      %483 = vmatpush2.msra.mxu0 0.0
      %484 = vmatprep.subr.mxu0 0.0
      %485 = vmatpush2.msra.mxu0 0.0
      %486 = vmatprep.subr.mxu0 0.0
      %487 = vmatpush2.msra.mxu0 0.0
      %488 = vmatprep.subr.mxu0 0.0
      %489 = vmatpush2.msra.mxu0 0.0
      %490 = vmatprep.subr.mxu0 0.0
      %491 = vmatpush2.msra.mxu0 0.0
      %492 = vmatprep.subr.mxu0 0.0
      %493 = vmatpush2.msra.mxu0 0.0
      %494 = vmatprep.subr.mxu0 0.0
      %495 = vmatpush2.msra.mxu0 0.0
      %496 = vmatprep.subr.mxu0 0.0
      %497 = vmatpush2.msra.mxu0 0.0
      %498 = vmatprep.subr.mxu0 0.0
      %499 = vmatpush2.msra.mxu0 0.0
      %500 = vmatprep.subr.mxu0 0.0
      %501 = vmatpush2.msra.mxu0 0.0
      %502 = vmatprep.subr.mxu0 0.0
      %503 = vmatpush2.msra.mxu0 0.0
      %504 = vmatprep.subr.mxu0 0.0
      %505 = vmatpush2.msra.mxu0 0.0
      %506 = vmatprep.subr.mxu0 0.0
      %507 = vmatpush2.msra.mxu0 0.0
      %508 = vmatprep.subr.mxu0 0.0
      %509 = vmatpush2.msra.mxu0 0.0
      %510 = vmatprep.subr.mxu0 0.0
      %511 = vmatpush2.msra.mxu0 0.0
      %512 = vmatprep.mubr.f32.mxu0 0.0
      %v513 = vand.u32 %v270, 4294901760
      %v514 = vsub.f32 %v270, %v513
      %515 = vmatmul.mubr.f32.gmra.mxu0 %v514
      %v516 = vpop.f32.mrf.mxu0
      %v517 = vadd.f32 %v437, %v516
      %v518 = vpop.f32.mrf.mxu0
      %519 = vmatprep.mubr.f32.mxu0 0.0
      %v520 = vand.u32 %v273, 4294901760
      %v521 = vsub.f32 %v273, %v520
      %522 = vmatmul.mubr.f32.gmra.mxu0 %v521
      %v523 = vpop.f32.mrf.mxu0
      %v524 = vadd.f32 %v443, %v523
      %v525 = vpop.f32.mrf.mxu0
      %526 = vdwg.mxu0
      %527 = vmatprep.subr.mxu0 0.0
      %528 = vmatpush1.msra.mxu0 0.0
      %529 = vmatprep.subr.mxu0 0.0
      %530 = vmatpush1.msra.mxu0 0.0
      %531 = vmatprep.subr.mxu0 0.0
      %532 = vmatpush1.msra.mxu0 0.0
      %533 = vmatprep.subr.mxu0 0.0
      %534 = vmatpush1.msra.mxu0 0.0
      %535 = vmatprep.subr.mxu0 0.0
      %536 = vmatpush1.msra.mxu0 0.0
      %537 = vmatprep.subr.mxu0 0.0
      %538 = vmatpush1.msra.mxu0 0.0
      %539 = vmatprep.subr.mxu0 0.0
      %540 = vmatpush1.msra.mxu0 0.0
      %541 = vmatprep.subr.mxu0 0.0
      %542 = vmatpush1.msra.mxu0 0.0
      %543 = vmatprep.subr.mxu0 0.0
      %544 = vmatpush1.msra.mxu0 0.0
      %545 = vmatprep.subr.mxu0 0.0
      %546 = vmatpush1.msra.mxu0 0.0
      %547 = vmatprep.subr.mxu0 0.0
      %548 = vmatpush1.msra.mxu0 0.0
      %549 = vmatprep.subr.mxu0 0.0
      %550 = vmatpush1.msra.mxu0 0.0
      %551 = vmatprep.subr.mxu0 0.0
      %552 = vmatpush1.msra.mxu0 0.0
      %553 = vmatprep.subr.mxu0 0.0
      %554 = vmatpush1.msra.mxu0 0.0
      %555 = vmatprep.subr.mxu0 0.0
      %556 = vmatpush1.msra.mxu0 0.0
      %557 = vmatprep.subr.mxu0 0.0
      %v558 = vand.u32 %v276, 4294901760
      %559 = vmatpush1.msra.mxu0 %v558
      %560 = vmatprep.subr.mxu0 0.0
      %561 = vmatpush2.msra.mxu0 0.0
      %562 = vmatprep.subr.mxu0 0.0
      %563 = vmatpush2.msra.mxu0 0.0
      %564 = vmatprep.subr.mxu0 0.0
      %565 = vmatpush2.msra.mxu0 0.0
      %566 = vmatprep.subr.mxu0 0.0
      %567 = vmatpush2.msra.mxu0 0.0
      %568 = vmatprep.subr.mxu0 0.0
      %569 = vmatpush2.msra.mxu0 0.0
      %570 = vmatprep.subr.mxu0 0.0
      %571 = vmatpush2.msra.mxu0 0.0
      %572 = vmatprep.subr.mxu0 0.0
      %573 = vmatpush2.msra.mxu0 0.0
      %574 = vmatprep.subr.mxu0 0.0
      %575 = vmatpush2.msra.mxu0 0.0
      %576 = vmatprep.subr.mxu0 0.0
      %577 = vmatpush2.msra.mxu0 0.0
      %578 = vmatprep.subr.mxu0 0.0
      %579 = vmatpush2.msra.mxu0 0.0
      %580 = vmatprep.subr.mxu0 0.0
      %581 = vmatpush2.msra.mxu0 0.0
      %582 = vmatprep.subr.mxu0 0.0
      %583 = vmatpush2.msra.mxu0 0.0
      %584 = vmatprep.subr.mxu0 0.0
      %585 = vmatpush2.msra.mxu0 0.0
      %586 = vmatprep.subr.mxu0 0.0
      %587 = vmatpush2.msra.mxu0 0.0
      %588 = vmatprep.subr.mxu0 0.0
      %589 = vmatpush2.msra.mxu0 0.0
      %590 = vmatprep.subr.mxu0 0.0
      %591 = vmatpush2.msra.mxu0 0.0
      %592 = vmatprep.mubr.f32.mxu0 0.0
      %v593 = vand.u32 %v270, 4294901760
      %v594 = vsub.f32 %v270, %v593
      %v595 = vand.u32 %v594, 4294901760
      %596 = vmatmul.mubr.f32.gmra.mxu0 %v595
      %v597 = vpop.f32.mrf.mxu0
      %v598 = vadd.f32 %v517, %v597
      %v599 = vpop.f32.mrf.mxu0
      %600 = vmatprep.mubr.f32.mxu0 0.0
      %v601 = vand.u32 %v273, 4294901760
      %v602 = vsub.f32 %v273, %v601
      %v603 = vand.u32 %v602, 4294901760
      %604 = vmatmul.mubr.f32.gmra.mxu0 %v603
      %v605 = vpop.f32.mrf.mxu0
      %v606 = vadd.f32 %v524, %v605
      %v607 = vpop.f32.mrf.mxu0
      %608 = vdwg.mxu0
      %609 = vmatprep.subr.mxu0 0.0
      %610 = vmatpush1.msra.mxu0 0.0
      %611 = vmatprep.subr.mxu0 0.0
      %612 = vmatpush1.msra.mxu0 0.0
      %613 = vmatprep.subr.mxu0 0.0
      %614 = vmatpush1.msra.mxu0 0.0
      %615 = vmatprep.subr.mxu0 0.0
      %616 = vmatpush1.msra.mxu0 0.0
      %617 = vmatprep.subr.mxu0 0.0
      %618 = vmatpush1.msra.mxu0 0.0
      %619 = vmatprep.subr.mxu0 0.0
      %620 = vmatpush1.msra.mxu0 0.0
      %621 = vmatprep.subr.mxu0 0.0
      %622 = vmatpush1.msra.mxu0 0.0
      %623 = vmatprep.subr.mxu0 0.0
      %624 = vmatpush1.msra.mxu0 0.0
      %625 = vmatprep.subr.mxu0 0.0
      %626 = vmatpush1.msra.mxu0 0.0
      %627 = vmatprep.subr.mxu0 0.0
      %628 = vmatpush1.msra.mxu0 0.0
      %629 = vmatprep.subr.mxu0 0.0
      %630 = vmatpush1.msra.mxu0 0.0
      %631 = vmatprep.subr.mxu0 0.0
      %632 = vmatpush1.msra.mxu0 0.0
      %633 = vmatprep.subr.mxu0 0.0
      %634 = vmatpush1.msra.mxu0 0.0
      %635 = vmatprep.subr.mxu0 0.0
      %636 = vmatpush1.msra.mxu0 0.0
      %637 = vmatprep.subr.mxu0 0.0
      %638 = vmatpush1.msra.mxu0 0.0
      %639 = vmatprep.subr.mxu0 0.0
      %v640 = vand.u32 %v276, 4294901760
      %v641 = vsub.f32 %v276, %v640
      %v642 = vand.u32 %v641, 4294901760
      %643 = vmatpush1.msra.mxu0 %v642
      %644 = vmatprep.subr.mxu0 0.0
      %645 = vmatpush2.msra.mxu0 0.0
      %646 = vmatprep.subr.mxu0 0.0
      %647 = vmatpush2.msra.mxu0 0.0
      %648 = vmatprep.subr.mxu0 0.0
      %649 = vmatpush2.msra.mxu0 0.0
      %650 = vmatprep.subr.mxu0 0.0
      %651 = vmatpush2.msra.mxu0 0.0
      %652 = vmatprep.subr.mxu0 0.0
      %653 = vmatpush2.msra.mxu0 0.0
      %654 = vmatprep.subr.mxu0 0.0
      %655 = vmatpush2.msra.mxu0 0.0
      %656 = vmatprep.subr.mxu0 0.0
      %657 = vmatpush2.msra.mxu0 0.0
      %658 = vmatprep.subr.mxu0 0.0
      %659 = vmatpush2.msra.mxu0 0.0
      %660 = vmatprep.subr.mxu0 0.0
      %661 = vmatpush2.msra.mxu0 0.0
      %662 = vmatprep.subr.mxu0 0.0
      %663 = vmatpush2.msra.mxu0 0.0
      %664 = vmatprep.subr.mxu0 0.0
      %665 = vmatpush2.msra.mxu0 0.0
      %666 = vmatprep.subr.mxu0 0.0
      %667 = vmatpush2.msra.mxu0 0.0
      %668 = vmatprep.subr.mxu0 0.0
      %669 = vmatpush2.msra.mxu0 0.0
      %670 = vmatprep.subr.mxu0 0.0
      %671 = vmatpush2.msra.mxu0 0.0
      %672 = vmatprep.subr.mxu0 0.0
      %673 = vmatpush2.msra.mxu0 0.0
      %674 = vmatprep.subr.mxu0 0.0
      %675 = vmatpush2.msra.mxu0 0.0
      %676 = vmatprep.mubr.f32.mxu0 0.0
      %v677 = vand.u32 %v270, 4294901760
      %678 = vmatmul.mubr.f32.gmra.mxu0 %v677
      %v679 = vpop.f32.mrf.mxu0
      %v680 = vadd.f32 %v598, %v679
      %v681 = vpop.f32.mrf.mxu0
      %682 = vmatprep.mubr.f32.mxu0 0.0
      %v683 = vand.u32 %v273, 4294901760
      %684 = vmatmul.mubr.f32.gmra.mxu0 %v683
      %v685 = vpop.f32.mrf.mxu0
      %v686 = vadd.f32 %v606, %v685
      %v687 = vpop.f32.mrf.mxu0
      %688 = vdwg.mxu0
      %689 = vmatprep.subr.mxu0 0.0
      %690 = vmatpush1.msra.mxu0 0.0
      %691 = vmatprep.subr.mxu0 0.0
      %692 = vmatpush1.msra.mxu0 0.0
      %693 = vmatprep.subr.mxu0 0.0
      %694 = vmatpush1.msra.mxu0 0.0
      %695 = vmatprep.subr.mxu0 0.0
      %696 = vmatpush1.msra.mxu0 0.0
      %697 = vmatprep.subr.mxu0 0.0
      %698 = vmatpush1.msra.mxu0 0.0
      %699 = vmatprep.subr.mxu0 0.0
      %700 = vmatpush1.msra.mxu0 0.0
      %701 = vmatprep.subr.mxu0 0.0
      %702 = vmatpush1.msra.mxu0 0.0
      %703 = vmatprep.subr.mxu0 0.0
      %704 = vmatpush1.msra.mxu0 0.0
      %705 = vmatprep.subr.mxu0 0.0
      %706 = vmatpush1.msra.mxu0 0.0
      %707 = vmatprep.subr.mxu0 0.0
      %708 = vmatpush1.msra.mxu0 0.0
      %709 = vmatprep.subr.mxu0 0.0
      %710 = vmatpush1.msra.mxu0 0.0
      %711 = vmatprep.subr.mxu0 0.0
      %712 = vmatpush1.msra.mxu0 0.0
      %713 = vmatprep.subr.mxu0 0.0
      %714 = vmatpush1.msra.mxu0 0.0
      %715 = vmatprep.subr.mxu0 0.0
      %716 = vmatpush1.msra.mxu0 0.0
      %717 = vmatprep.subr.mxu0 0.0
      %718 = vmatpush1.msra.mxu0 0.0
      %719 = vmatprep.subr.mxu0 0.0
      %v720 = vand.u32 %v276, 4294901760
      %721 = vmatpush1.msra.mxu0 %v720
      %722 = vmatprep.subr.mxu0 0.0
      %723 = vmatpush2.msra.mxu0 0.0
      %724 = vmatprep.subr.mxu0 0.0
      %725 = vmatpush2.msra.mxu0 0.0
      %726 = vmatprep.subr.mxu0 0.0
      %727 = vmatpush2.msra.mxu0 0.0
      %728 = vmatprep.subr.mxu0 0.0
      %729 = vmatpush2.msra.mxu0 0.0
      %730 = vmatprep.subr.mxu0 0.0
      %731 = vmatpush2.msra.mxu0 0.0
      %732 = vmatprep.subr.mxu0 0.0
      %733 = vmatpush2.msra.mxu0 0.0
      %734 = vmatprep.subr.mxu0 0.0
      %735 = vmatpush2.msra.mxu0 0.0
      %736 = vmatprep.subr.mxu0 0.0
      %737 = vmatpush2.msra.mxu0 0.0
      %738 = vmatprep.subr.mxu0 0.0
      %739 = vmatpush2.msra.mxu0 0.0
      %740 = vmatprep.subr.mxu0 0.0
      %741 = vmatpush2.msra.mxu0 0.0
      %742 = vmatprep.subr.mxu0 0.0
      %743 = vmatpush2.msra.mxu0 0.0
      %744 = vmatprep.subr.mxu0 0.0
      %745 = vmatpush2.msra.mxu0 0.0
      %746 = vmatprep.subr.mxu0 0.0
      %747 = vmatpush2.msra.mxu0 0.0
      %748 = vmatprep.subr.mxu0 0.0
      %749 = vmatpush2.msra.mxu0 0.0
      %750 = vmatprep.subr.mxu0 0.0
      %751 = vmatpush2.msra.mxu0 0.0
      %752 = vmatprep.subr.mxu0 0.0
      %753 = vmatpush2.msra.mxu0 0.0
      %754 = vmatprep.mubr.f32.mxu0 0.0
      %v755 = vand.u32 %v270, 4294901760
      %756 = vmatmul.mubr.f32.gmra.mxu0 %v755
      %v757 = vpop.f32.mrf.mxu0
      %v758 = vadd.f32 %v680, %v757
      %v759 = vpop.f32.mrf.mxu0
      %760 = vmatprep.mubr.f32.mxu0 0.0
      %v761 = vand.u32 %v273, 4294901760
      %762 = vmatmul.mubr.f32.gmra.mxu0 %v761
      %v763 = vpop.f32.mrf.mxu0
      %v764 = vadd.f32 %v686, %v763
      %v765 = vpop.f32.mrf.mxu0
      %766 = vdwg.mxu0
      %v767 = vadd.f32 %v256, %v268
      %v768 = vadd.f32 %v259, %v268
      %v769 = vmul.f32 %v758, 2.0
      %v770 = vmul.f32 %v764, 2.0
      %v771 = vsub.f32 %v767, %v769
      %v772 = vsub.f32 %v768, %v770
      %v773 = vmax.f32 %v771, 0.0
      %v774 = vmax.f32 %v772, 0.0
      %775 = vmin.xlane.f32.xlu0 %v773
      %v776 = vpop.xlane.xlu0 %775
      %777 = vmin.xlane.f32.xlu0 %v774
      %v778 = vpop.xlane.xlu0 %777
      %v779 = vmin.f32 %v773, %v774
      %v780 = vrot.slane %v779, 4
      %v781 = vmin.f32 %v779, %v780
      %v782 = vrot.slane %v781, 2
      %v783 = vmin.f32 %v781, %v782
      %v784 = vrot.slane %v783, 1
      %v785 = vmin.f32 %v783, %v784
      // Predicated region
      $region33: #{chamfer_distance_l2_split.1} parent=27 // pred_check
        %p786 = pneg %p240
      $region34: #{chamfer_distance_l2_split.1} parent=27 // pred_check_branch
        %788 = sbr.rel (%p786) target = $region36
      $region35: #{chamfer_distance_l2_split.1} parent=27 // pred_region
        %vm789 = vcmask 7168
        %790 = vst.msk [vmem:[#allocation2] sm:$0xff] %vm789, %v776
        %791 = vst.msk [vmem:[#allocation2 + $0x8] sm:$0xff] %vm789, %v778
      $region36: #{chamfer_distance_l2_split.1} parent=27 // pred_fallthru
        _
      %p792 = scmp.gt.s32.totalorder %s22, 0
      // Predicated region
      $region37: #{chamfer_distance_l2_split.1} parent=27 // pred_check
        %p793 = pneg %p792
      $region38: #{chamfer_distance_l2_split.1} parent=27 // pred_check_branch
        %795 = sbr.rel (%p793) target = $region40
      $region39: #{chamfer_distance_l2_split.1} parent=27 // pred_region
        %v796 = vld [vmem:[#allocation2] sm:$0xff]
        %v797 = vld [vmem:[#allocation2 + $0x8] sm:$0xff]
        %v798 = vmin.f32 %v796, %v776
        %v799 = vmin.f32 %v797, %v778
        %vm800 = vcmask 7168
        %801 = vst.msk [vmem:[#allocation2] sm:$0xff] %vm800, %v798
        %802 = vst.msk [vmem:[#allocation2 + $0x8] sm:$0xff] %vm800, %v799
      $region40: #{chamfer_distance_l2_split.1} parent=27 // pred_fallthru
        _
      // Predicated region
      $region41: #{chamfer_distance_l2_split.1} parent=27 // pred_check
        %p803 = pneg %p240
      $region42: #{chamfer_distance_l2_split.1} parent=27 // pred_check_branch
        %805 = sbr.rel (%p803) target = $region44
      $region43: #{chamfer_distance_l2_split.1} parent=27 // pred_region
        %s806 = smul.u32 %s21, 16
        %v807 = vlaneseq
        %v808 = vshrl.u32 %v807, 7
        %v809 = vadd.s32 %v808, 8
        %v810 = vstv %s806
        %v811 = vadd.s32 %v810, %v808
        %v812 = vadd.s32 %v810, %v809
        %vm813 = vcmp.lt.s32.totalorder %v811, 16
        %vm814 = vcmp.lt.s32.totalorder %v812, 16
        %v815 = vld [vmem:[%s235] sm:$0x1]
        %v816 = vld [vmem:[#allocation2] sm:$0xff]
        %v817 = vld [vmem:[#allocation2 + $0x8] sm:$0xff]
        %v818 = vsel %vm813, %v816, 0.0
        %v819 = vsel %vm814, %v817, 0.0
        %vm820 = vcmask 7168
        %v821 = vsel %vm820, %v818, 0.0
        %v822 = vsel %vm820, %v819, 0.0
        %v823 = vadd.f32 %v821, %v822
        %824 = vadd.xlane.f32.xlu0 %v823
        %v825 = vpop.xlane.xlu0 %824
        %v826 = vrot.slane %v825, 4
        %v827 = vadd.f32 %v825, %v826
        %v828 = vrot.slane %v827, 2
        %v829 = vadd.f32 %v827, %v828
        %v830 = vrot.slane %v829, 1
        %v831 = vadd.f32 %v829, %v830
        %s832 = vtos %v831
        %v833 = vstv %s832
        %v834 = vadd.f32 %v815, %v833
        %vm835 = vcmask 0
        %836 = vst.msk [vmem:[%s235] sm:$0x1] %vm835, %v834
      $region44: #{chamfer_distance_l2_split.1} parent=27 // pred_fallthru
        _
      %s837 = smul.u32 %s22, 128
      // Predicated region
      $region45: #{chamfer_distance_l2_split.1} parent=27 // pred_check
        %p838 = pneg %p239
      $region46: #{chamfer_distance_l2_split.1} parent=27 // pred_check_branch
        %840 = sbr.rel (%p838) target = $region48
      $region47: #{chamfer_distance_l2_split.1} parent=27 // pred_region
        %s841 = sshra.s32 %s837, 7
        %s842 = sand.u32 %s837, 127
        %s843 = scalar_lea.vmem [#allocation3], %s841
        %844 = vst [vmem:[%s843] sm:$0x1] %v785
      $region48: #{chamfer_distance_l2_split.1} parent=27 // pred_fallthru
        _
      %p845 = scmp.gt.s32.totalorder %s21, 0
      // Predicated region
      $region49: #{chamfer_distance_l2_split.1} parent=27 // pred_check
        %p846 = pneg %p845
      $region50: #{chamfer_distance_l2_split.1} parent=27 // pred_check_branch
        %848 = sbr.rel (%p846) target = $region52
      $region51: #{chamfer_distance_l2_split.1} parent=27 // pred_region
        %s849 = sshra.s32 %s837, 7
        %s850 = sand.u32 %s837, 127
        %s851 = scalar_lea.vmem [#allocation3], %s849
        %v852 = vld [vmem:[%s851] sm:$0x1]
        %v853 = vmin.f32 %v852, %v785
        %854 = vst [vmem:[%s851] sm:$0x1] %v853
      $region52: #{chamfer_distance_l2_split.1} parent=27 // pred_fallthru
        _
      // Predicated region
      $region53: #{chamfer_distance_l2_split.1} parent=27 // pred_check
        %p855 = pneg %p239
      $region54: #{chamfer_distance_l2_split.1} parent=27 // pred_check_branch
        %857 = sbr.rel (%p855) target = $region56
      $region55: #{chamfer_distance_l2_split.1} parent=27 // pred_region
        %v858 = vlaneseq
        %v859 = vand.u32 %v858, 127
        %v860 = vstv %s837
        %v861 = vadd.s32 %v860, %v859
        %vm862 = vcmp.lt.s32.totalorder %v861, 8
        %v863 = vld [vmem:[%s238] sm:$0x1]
        %s864 = sshra.s32 %s837, 7
        %s865 = sand.u32 %s837, 127
        %s866 = scalar_lea.vmem [#allocation3], %s864
        %v867 = vld [vmem:[%s866] sm:$0x1]
        %v868 = vsel %vm862, %v867, 0.0
        %vm869 = vcmask 1040384
        %v870 = vsel %vm869, %v868, 0.0
        %871 = vadd.xlane.f32.xlu0 %v870
        %v872 = vpop.xlane.xlu0 %871
        %v873 = vrot.slane %v872, 4
        %v874 = vadd.f32 %v872, %v873
        %v875 = vrot.slane %v874, 2
        %v876 = vadd.f32 %v874, %v875
        %v877 = vrot.slane %v876, 1
        %v878 = vadd.f32 %v876, %v877
        %s879 = vtos %v878
        %v880 = vstv %s879
        %v881 = vadd.f32 %v863, %v880
        %vm882 = vcmask 0
        %883 = vst.msk [vmem:[%s238] sm:$0x1] %vm882, %v881
      $region56: #{chamfer_distance_l2_split.1} parent=27 // pred_fallthru
        _
      %p884 = scmp.lt.s32.totalorder %s20, 1
      %s885 = scalar_select %p884, %s20, 1
      %s886 = scalar_lea.vmem %s2, %s885
      %p887 = scmp.lt.s32.totalorder %s20, 1
      %s888 = scalar_select %p887, %s20, 1
      %s889 = scalar_lea.vmem %s3, %s888
      // Predicated region
      $region57: #{chamfer_distance_l2_split.1} parent=27 // pred_check
        %p890 = pneg %p108
      $region58: #{chamfer_distance_l2_split.1} parent=27 // pred_check_branch
        %892 = sbr.rel (%p890) target = $region60
      $region59: #{chamfer_distance_l2_split.1} parent=27 // pred_region
        _
      $region60: #{chamfer_distance_l2_split.1} parent=27 // pred_fallthru
        _
      // Predicated region
      $region61: #{chamfer_distance_l2_split.1} parent=27 // pred_check
        %p893 = pneg %p134
      $region62: #{chamfer_distance_l2_split.1} parent=27 // pred_check_branch
        %895 = sbr.rel (%p893) target = $region64
      $region63: #{chamfer_distance_l2_split.1} parent=27 // pred_region
        _
      $region64: #{chamfer_distance_l2_split.1} parent=27 // pred_fallthru
        _
    $region28: #{chamfer_distance_l2_split.1} parent=5 // pred_fallthru
      _
    %p896 = scmp.le.s32.totalorder 2, %s10
    // Predicated region
    $region65: #{chamfer_distance_l2_split.1} parent=5 // pred_check
      %p897 = pneg %p896
    $region66: #{chamfer_distance_l2_split.1} parent=5 // pred_check_branch
      %899 = sbr.rel (%p897) target = $region68
    $region67: #{chamfer_distance_l2_split.1} parent=5 // pred_region
      %s900 = ssub.s32 %s10, 2
      // Predicated region
      $region69: #{chamfer_distance_l2_split.1} parent=67 // pred_check
        %p901 = pneg %p114
      $region70: #{chamfer_distance_l2_split.1} parent=67 // pred_check_branch
        %903 = sbr.rel (%p901) target = $region72
      $region71: #{chamfer_distance_l2_split.1} parent=67 // pred_region
        %p904 = scmp.lt.s32.totalorder %s23, 1
        %s905 = scalar_select %p904, %s23, 1
        %s906 = scalar_lea.vmem %s2, %s905
      $region72: #{chamfer_distance_l2_split.1} parent=67 // pred_fallthru
        _
      // Predicated region
      $region73: #{chamfer_distance_l2_split.1} parent=67 // pred_check
        %p907 = pneg %p140
      $region74: #{chamfer_distance_l2_split.1} parent=67 // pred_check_branch
        %909 = sbr.rel (%p907) target = $region76
      $region75: #{chamfer_distance_l2_split.1} parent=67 // pred_region
        %p910 = scmp.lt.s32.totalorder %s23, 1
        %s911 = scalar_select %p910, %s23, 1
        %s912 = scalar_lea.vmem %s3, %s911
      $region76: #{chamfer_distance_l2_split.1} parent=67 // pred_fallthru
        _
    $region68: #{chamfer_distance_l2_split.1} parent=5 // pred_fallthru
      _
  $region6: #{chamfer_distance_l2_split.1} parent=0 // loop_footer
    %s14 = sadd.s32 1, %s10
  $region7: #{chamfer_distance_l2_split.1} parent=0 // loop_footer_branch
    %9 = sbr.rel target = $region3
  $region8: #{chamfer_distance_l2_split.1} parent=0 // loop_exit
    _

</llo_original>
